<compile_context>
chip_gen: v6e
topology: v6e:2x2x1
jax: 0.10.0
libtpu: 0.0.40
codegen_flags: <defaults>
</compile_context>

<pallas_src>
import functools

import jax
import jax.numpy as jnp
from jax.experimental import pallas as pl
from jax.experimental.pallas import tpu as pltpu

_LANES = 128
_SUBLANES = 8
_MAX_TILE_ROWS = 4096   # 4096 rows x 128 lanes x 4 B = 2 MiB f32 per input block


def _round_up(x, m):
    return ((x + m - 1) // m) * m


def _mape_kernel(y_ref, yp_ref, o_ref, *, eps, count, rows_per_split,
                 tile_rows, need_mask):
    c = pl.program_id(0)
    i = pl.program_id(1)

    @pl.when(i == 0)
    def _init():
        o_ref[...] = jnp.zeros_like(o_ref)

    # Cast after the DMA so sub-32-bit inputs travel HBM->VMEM at their width.
    y = y_ref[...].astype(jnp.float32)
    yp = yp_ref[...].astype(jnp.float32)

    denom = y + jnp.float32(eps)
    if eps == 0.0:
        # Keep exact divide so y == 0 yields inf exactly like the reference.
        term = jnp.abs(y - yp) / denom
    else:
        # Divide on the EUP slot: approx reciprocal + one Newton step (~1e-7
        # relative error, well inside rtol=1e-5).
        r = pl.reciprocal(denom, approx=True)
        r = r * (jnp.float32(2.0) - denom * r)
        term = jnp.abs(y - yp) * r

    def _fold(t):
        # Pure-VPU fold of the tile onto one (8,128) vreg; the single cross-lane
        # reduce happens once, outside the kernel, on the tiny partial output.
        return t.reshape(tile_rows // _SUBLANES, _SUBLANES, _LANES).sum(axis=0)

    if need_mask:
        last = pl.num_programs(1) - 1

        @pl.when(i < last)
        def _accumulate():
            o_ref[...] += _fold(term)

        @pl.when(i == last)
        def _accumulate_masked():
            # Only the final block of a split can hold garbage rows (the block
            # overhangs the array) or ragged zero padding (matters for eps==0).
            # Everything valid in split c has flat index < limit.  Keep this a
            # select: the discarded branch may contain Inf/NaN garbage.
            limit = jnp.minimum(jnp.int32(count),
                                (c + 1) * (rows_per_split * _LANES))
            row = jax.lax.broadcasted_iota(jnp.int32, (tile_rows, _LANES), 0)
            lane = jax.lax.broadcasted_iota(jnp.int32, (tile_rows, _LANES), 1)
            flat = (c * rows_per_split + i * tile_rows + row) * _LANES + lane
            masked = jnp.where(flat < limit, term, jnp.float32(0.0))
            o_ref[...] += _fold(masked)
    else:
        o_ref[...] += _fold(term)


def mape_loss(y, y_pred, eps=1.0, *, max_tile_rows=_MAX_TILE_ROWS,
              num_splits=1, core_parallel=False):
    """Pallas TPU implementation of MAPELoss.forward."""
    assert y.shape == y_pred.shape
    count = int(y.size)
    assert count > 0
    eps = float(eps)
    max_tile_rows = _round_up(int(max_tile_rows), _SUBLANES)

    splits = max(int(num_splits), 1)
    rows = pl.cdiv(count, _LANES)
    if splits > 1:
        if rows < splits * _SUBLANES:
            splits = 1                 # too small to be worth sharding
        elif count % _LANES == 0 and rows % splits != 0:
            splits = 1                 # keep the zero-copy reshape path
    rows = _round_up(rows, splits)
    padded = rows * _LANES
    rows_per_split = rows // splits

    tile_rows = min(_round_up(rows_per_split, _SUBLANES), max_tile_rows)
    num_tiles = pl.cdiv(rows_per_split, tile_rows)
    # Mask is needed only when the last block overhangs the array (garbage rows)
    # or when ragged zero-padding would hit 0/0 (eps == 0); with eps > 0 the
    # padded zeros contribute exactly 0 and the mean still divides by `count`.
    need_mask = (rows_per_split % tile_rows != 0) or (padded != count and eps == 0.0)

    yf = jnp.ravel(y)
    ypf = jnp.ravel(y_pred)
    if padded != count:
        # Ragged element count: minimal pad to the next multiple of splits*128.
        yf = jnp.pad(yf, (0, padded - count))
        ypf = jnp.pad(ypf, (0, padded - count))
    y3 = yf.reshape(splits, rows_per_split, _LANES)
    yp3 = ypf.reshape(splits, rows_per_split, _LANES)

    if splits > 1 and core_parallel:
        semantics = (pltpu.CORE_PARALLEL, pltpu.ARBITRARY)   # v7x 2-TC sharding
    elif splits > 1:
        semantics = ("parallel", "arbitrary")
    else:
        semantics = ("arbitrary", "arbitrary")

    kernel = functools.partial(
        _mape_kernel, eps=eps, count=count, rows_per_split=rows_per_split,
        tile_rows=tile_rows, need_mask=need_mask)

    partials = pl.pallas_call(
        kernel,
        out_shape=jax.ShapeDtypeStruct((splits, _SUBLANES, _LANES), jnp.float32),
        grid_spec=pltpu.PrefetchScalarGridSpec(
            num_scalar_prefetch=0,
            grid=(splits, num_tiles),
            in_specs=[
                pl.BlockSpec((None, tile_rows, _LANES), lambda c, i: (c, i, 0)),
                pl.BlockSpec((None, tile_rows, _LANES), lambda c, i: (c, i, 0)),
            ],
            out_specs=pl.BlockSpec((None, _SUBLANES, _LANES),
                                   lambda c, i: (c, 0, 0)),
        ),
        compiler_params=pltpu.CompilerParams(
            dimension_semantics=semantics,
            vmem_limit_bytes=32 * 1024 * 1024,
        ),
    )(y3, yp3)

    # Single cross-lane reduce of the tiny partial-sum output + mean.
    return jnp.sum(partials) / jnp.float32(count)


if __name__ == "__main__":
    key = jax.random.PRNGKey(0)
    k1, k2, k3, k4, k5, k6 = jax.random.split(key, 6)

    # Main check: small NCHW regression-style targets (lane-aligned -> zero-copy).
    y = jax.random.uniform(k1, (2, 4, 16, 16), dtype=jnp.float32)
    y_pred = jax.random.uniform(k2, (2, 4, 16, 16), dtype=jnp.float32)
    loss = mape_loss(y, y_pred, eps=1.0)
    jax.block_until_ready(loss)
    ref = jnp.mean(jnp.abs(y - y_pred) / (y + 1.0))
    assert jnp.allclose(loss, ref, rtol=1e-5, atol=1e-6), (loss, ref)

    # Ragged element count with a forced multi-tile grid: exercises the minimal
    # pad, the partial/edge last block, and the pl.when-gated tail mask.
    ya = jax.random.uniform(k3, (5, 7, 13, 11), dtype=jnp.float32)
    yb = jax.random.uniform(k4, (5, 7, 13, 11), dtype=jnp.float32)
    la = mape_loss(ya, yb, eps=1.0, max_tile_rows=16)
    ra = jnp.mean(jnp.abs(ya - yb) / (ya + 1.0))
    assert jnp.allclose(la, ra, rtol=1e-5, atol=1e-6), (la, ra)

    # Larger lane-aligned input: multi-tile accumulation plus the two-way split
    # of the row range over the leading grid axis (the v7x configuration).
    yc = jax.random.uniform(k5, (16, 8, 32, 32), dtype=jnp.float32)
    yd = jax.random.uniform(k6, (16, 8, 32, 32), dtype=jnp.float32)
    lc = mape_loss(yc, yd, eps=1.0, max_tile_rows=128, num_splits=2)
    rc = jnp.mean(jnp.abs(yc - yd) / (yc + 1.0))
    assert jnp.allclose(lc, rc, rtol=1e-5, atol=1e-6), (lc, rc)

    print("KERNEL_OK")
</pallas_src>

<mosaic_0001>
module attributes {stable_mosaic.version = 11 : i64} {
  func.func @_mape_kernel(%arg0: i32, %arg1: i32, %arg2: memref<1x16x128xf32, #tpu.memory_space<vmem>>, %arg3: memref<1x16x128xf32, #tpu.memory_space<vmem>>, %arg4: memref<1x8x128xf32, #tpu.memory_space<vmem>>) attributes {dimension_semantics = [#tpu.dimension_semantics<arbitrary>, #tpu.dimension_semantics<arbitrary>], iteration_bounds = array<i64: 1, 1>, scalar_prefetch = 0 : i64, scratch_operands = 0 : i64, tpu.core_type = #tpu.core_type<tc>, window_params = [{transform_indices = @transform_0, window_bounds = array<i64: 1, 16, 128>}, {transform_indices = @transform_1, window_bounds = array<i64: 1, 16, 128>}, {transform_indices = @transform_2, window_bounds = array<i64: 1, 8, 128>}]} {
    %c0_i32 = arith.constant 0 : i32
    %0 = arith.cmpi eq, %arg1, %c0_i32 : i32
    %1 = arith.extui %0 : i1 to i32
    %c0_i32_0 = arith.constant 0 : i32
    %2 = arith.cmpi ne, %1, %c0_i32_0 : i32
    scf.if %2 {
      %cst_14 = arith.constant 0.000000e+00 : f32
      %25 = vector.broadcast %cst_14 : f32 to vector<8x128xf32>
      %c0_15 = arith.constant 0 : index
      %c0_16 = arith.constant 0 : index
      %c0_17 = arith.constant 0 : index
      %26 = vector.load %arg4[%c0_15, %c0_16, %c0_17] : memref<1x8x128xf32, #tpu.memory_space<vmem>>, vector<1x8x128xf32>
      %27 = vector.shape_cast %26 : vector<1x8x128xf32> to vector<8x128xf32>
      %28 = vector.shape_cast %25 : vector<8x128xf32> to vector<1x8x128xf32>
      tpu.vector_store %arg4[%c0_15, %c0_16, %c0_17], %28 {strides = array<i32>} : memref<1x8x128xf32, #tpu.memory_space<vmem>>, vector<1x8x128xf32>,
    } else {
    }
    %c0 = arith.constant 0 : index
    %c0_1 = arith.constant 0 : index
    %c0_2 = arith.constant 0 : index
    %3 = vector.load %arg2[%c0, %c0_1, %c0_2] : memref<1x16x128xf32, #tpu.memory_space<vmem>>, vector<1x16x128xf32>
    %4 = vector.shape_cast %3 : vector<1x16x128xf32> to vector<16x128xf32>
    %c0_3 = arith.constant 0 : index
    %c0_4 = arith.constant 0 : index
    %c0_5 = arith.constant 0 : index
    %5 = vector.load %arg3[%c0_3, %c0_4, %c0_5] : memref<1x16x128xf32, #tpu.memory_space<vmem>>, vector<1x16x128xf32>
    %6 = vector.shape_cast %5 : vector<1x16x128xf32> to vector<16x128xf32>
    %cst = arith.constant 1.000000e+00 : f32
    %7 = vector.broadcast %cst : f32 to vector<16x128xf32>
    %8 = arith.addf %4, %7 : vector<16x128xf32>
    %9 = tpu.reciprocal %8 {approx = true} : vector<16x128xf32> -> vector<16x128xf32>
    %10 = arith.mulf %8, %9 : vector<16x128xf32>
    %cst_6 = arith.constant 2.000000e+00 : f32
    %11 = vector.broadcast %cst_6 : f32 to vector<16x128xf32>
    %12 = arith.subf %11, %10 : vector<16x128xf32>
    %13 = arith.mulf %9, %12 : vector<16x128xf32>
    %14 = arith.subf %4, %6 : vector<16x128xf32>
    %15 = math.absf %14 : vector<16x128xf32>
    %16 = arith.mulf %15, %13 : vector<16x128xf32>
    %c0_7 = arith.constant 0 : index
    %c0_8 = arith.constant 0 : index
    %c0_9 = arith.constant 0 : index
    %17 = vector.load %arg4[%c0_7, %c0_8, %c0_9] : memref<1x8x128xf32, #tpu.memory_space<vmem>>, vector<1x8x128xf32>
    %18 = vector.shape_cast %17 : vector<1x8x128xf32> to vector<8x128xf32>
    %19 = vector.shape_cast %16 : vector<16x128xf32> to vector<2x8x128xf32>
    %cst_10 = arith.constant dense<0.000000e+00> : vector<8x128xf32>
    %20 = vector.multi_reduction <add>, %19, %cst_10 [0] : vector<2x8x128xf32> to vector<8x128xf32>
    %21 = arith.addf %18, %20 : vector<8x128xf32>
    %c0_11 = arith.constant 0 : index
    %c0_12 = arith.constant 0 : index
    %c0_13 = arith.constant 0 : index
    %22 = vector.load %arg4[%c0_11, %c0_12, %c0_13] : memref<1x8x128xf32, #tpu.memory_space<vmem>>, vector<1x8x128xf32>
    %23 = vector.shape_cast %22 : vector<1x8x128xf32> to vector<8x128xf32>
    %24 = vector.shape_cast %21 : vector<8x128xf32> to vector<1x8x128xf32>
    tpu.vector_store %arg4[%c0_11, %c0_12, %c0_13], %24 {strides = array<i32>} : memref<1x8x128xf32, #tpu.memory_space<vmem>>, vector<1x8x128xf32>,
    return
  }
  func.func @transform_0(%arg0: i32, %arg1: i32) -> (i32, i32, i32) {
    %c0_i32 = arith.constant 0 : i32
    %c0_i32_0 = arith.constant 0 : i32
    return %arg0, %arg1, %c0_i32 : i32, i32, i32
  }
  func.func @transform_1(%arg0: i32, %arg1: i32) -> (i32, i32, i32) {
    %c0_i32 = arith.constant 0 : i32
    %c0_i32_0 = arith.constant 0 : i32
    return %arg0, %arg1, %c0_i32 : i32, i32, i32
  }
  func.func @transform_2(%arg0: i32, %arg1: i32) -> (i32, i32, i32) {
    %c0_i32 = arith.constant 0 : i32
    %c0_i32_0 = arith.constant 0 : i32
    %c0_i32_1 = arith.constant 0 : i32
    return %arg0, %c0_i32, %c0_i32_0 : i32, i32, i32
  }
}

</mosaic_0001>

<llo_original>
// kernel: tpu_custom_call.1
$region0: #{tpu_custom_call.1}
  #allocation0 [shape = 'u32[]', space=smem, size = 0x4, offset = 0x4, fixed_abs, tag = 'smem constant byte address 0x4 - core index']
  #allocation1 [shape = 'u32[144,128]{1,0:T(1,128)}', space=vmem, size = 0x12000, scoped, tag = 'internal scratch']
  %s0 = inlined_call_operand.hbm [shape: f32[1,16,128], index: 0, kind: input, shape index: {}]
  %s1 = inlined_call_operand.hbm [shape: f32[1,16,128], index: 1, kind: input, shape index: {}]
  %s2 = inlined_call_operand.hbm [shape: f32[1,8,128], index: 2, kind: output, shape index: {}]
  %s3 = sld [smem:[#allocation0]]
  $region30: #{tpu_custom_call.1} parent=0
    _
  %s5 = ssub.s32 1, %s3
  %s6 = scalar_select 0, %s5, %s3
  $region1: #{tpu_custom_call.1} parent=0
    #allocation2 [shape = 'u8[8192]{0}', space=vmem, size = 0x2000, scoped, tag = 'input window, operand 0, single buffered']
    #allocation3 [shape = 's32[1]{0}', space=sflag, size = 0x4, scoped, tag = 'scoped memory for tpu_custom_call.1']
    #allocation4 [shape = 's32[1]{0}', space=sflag, size = 0x4, scoped, tag = 'scoped memory for tpu_custom_call.1']
    #allocation5 [shape = 'u8[8192]{0}', space=vmem, size = 0x2000, scoped, tag = 'input window, operand 1, single buffered']
    #allocation6 [shape = 's32[1]{0}', space=sflag, size = 0x4, scoped, tag = 'scoped memory for tpu_custom_call.1']
    #allocation7 [shape = 'u8[4096]{0}', space=vmem, size = 0x1000, scoped, tag = 'output window, operand 0, single buffered']
    %7 = vsyncpa [#allocation3], 0
    %8 = vsyncpa [#allocation6], 0
    %9 = vsyncpa [#allocation4], 0
    // Predicated region
    $region2: #{tpu_custom_call.1} parent=1 // pred_check
      _
    $region3: #{tpu_custom_call.1} parent=1 // pred_check_branch
      %11 = sbr.rel (0) target = $region5
    $region4: #{tpu_custom_call.1} parent=1 // pred_region
      %s13 = ssub.s32 256, 256
      %14 = vsyncadd [#allocation3], %s13
      %s15 = sshll.u32 [#allocation2], 4
      %s16 = int_to_ptr.vmem [resolvable:$true] %s15
      %21 = dma.hbm_to_vmem [thread:$0]  %s0, 256, %s16, [#allocation3], 128, 128, 8
    $region5: #{tpu_custom_call.1} parent=1 // pred_fallthru
      _
    // Predicated region
    $region6: #{tpu_custom_call.1} parent=1 // pred_check
      _
    $region7: #{tpu_custom_call.1} parent=1 // pred_check_branch
      %23 = sbr.rel (0) target = $region9
    $region8: #{tpu_custom_call.1} parent=1 // pred_region
      %s25 = ssub.s32 256, 256
      %26 = vsyncadd [#allocation6], %s25
      %s27 = sshll.u32 [#allocation5], 4
      %s28 = int_to_ptr.vmem [resolvable:$true] %s27
      %33 = dma.hbm_to_vmem [thread:$0]  %s1, 256, %s28, [#allocation6], 128, 128, 8
    $region9: #{tpu_custom_call.1} parent=1 // pred_fallthru
      _
    // Predicated region
    $region10: #{tpu_custom_call.1} parent=1 // pred_check
      _
    $region11: #{tpu_custom_call.1} parent=1 // pred_check_branch
      %35 = sbr.rel (0) target = $region13
    $region12: #{tpu_custom_call.1} parent=1 // pred_region
      %36 = dma.done [#allocation3], 256
    $region13: #{tpu_custom_call.1} parent=1 // pred_fallthru
      _
    // Predicated region
    $region14: #{tpu_custom_call.1} parent=1 // pred_check
      _
    $region15: #{tpu_custom_call.1} parent=1 // pred_check_branch
      %38 = sbr.rel (0) target = $region17
    $region16: #{tpu_custom_call.1} parent=1 // pred_region
      %39 = dma.done [#allocation6], 256
    $region17: #{tpu_custom_call.1} parent=1 // pred_fallthru
      _
    %p40 = scmp.eq.s32.totalorder 0, 0
    // Predicated region
    $region18: #{tpu_custom_call.1} parent=1 // pred_check
      %p41 = pneg %p40
    $region19: #{tpu_custom_call.1} parent=1 // pred_check_branch
      %43 = sbr.rel (%p41) target = $region21
    $region20: #{tpu_custom_call.1} parent=1 // pred_region
      %44 = vst [vmem:[#allocation7] sm:$0xff] 0.0
    $region21: #{tpu_custom_call.1} parent=1 // pred_fallthru
      _
    %v45 = vld [vmem:[#allocation2] sm:$0xff]
    %v46 = vld [vmem:[#allocation2 + $0x8] sm:$0xff]
    %v47 = vld [vmem:[#allocation5] sm:$0xff]
    %v48 = vld [vmem:[#allocation5 + $0x8] sm:$0xff]
    %v49 = vadd.f32 %v45, 1.0
    %v50 = vadd.f32 %v46, 1.0
    %v51 = vrcp.pop %v49
    %v52 = vrcp.pop %v50
    %v53 = vmul.f32 %v49, %v51
    %v54 = vmul.f32 %v50, %v52
    %v55 = vsub.f32 2.0, %v53
    %v56 = vsub.f32 2.0, %v54
    %v57 = vmul.f32 %v51, %v55
    %v58 = vmul.f32 %v52, %v56
    %v59 = vsub.f32 %v45, %v47
    %v60 = vsub.f32 %v46, %v48
    %v61 = vand.u32 2147483647, %v59
    %v62 = vand.u32 2147483647, %v60
    %v63 = vmul.f32 %v61, %v57
    %v64 = vmul.f32 %v62, %v58
    %v65 = vld [vmem:[#allocation7] sm:$0xff]
    %v66 = vadd.f32 %v63, %v64
    %v67 = vadd.f32 %v65, %v66
    %68 = vst [vmem:[#allocation7] sm:$0xff] %v67
    // Predicated region
    $region22: #{tpu_custom_call.1} parent=1 // pred_check
      _
    $region23: #{tpu_custom_call.1} parent=1 // pred_check_branch
      %70 = sbr.rel (0) target = $region25
    $region24: #{tpu_custom_call.1} parent=1 // pred_region
      %s72 = ssub.s32 128, 128
      %73 = vsyncadd [#allocation4], %s72
      %s75 = sshll.u32 [#allocation7], 4
      %s76 = int_to_ptr.vmem [resolvable:$true] %s75
      %78 = dma.vmem_to_hbm [thread:$0]  %s76, 128, %s2, [#allocation4]
    $region25: #{tpu_custom_call.1} parent=1 // pred_fallthru
      _
    // Predicated region
    $region26: #{tpu_custom_call.1} parent=1 // pred_check
      _
    $region27: #{tpu_custom_call.1} parent=1 // pred_check_branch
      %80 = sbr.rel (0) target = $region29
    $region28: #{tpu_custom_call.1} parent=1 // pred_region
      %81 = dma.done [#allocation4], 128
    $region29: #{tpu_custom_call.1} parent=1 // pred_fallthru
      _
    %82 = vsyncpa [#allocation3], 1
    %83 = vsyncpa [#allocation6], 1
    %84 = vsyncpa [#allocation4], 1

</llo_original>
